<compile_context>
chip_gen: v6e
topology: v6e:2x2x1
jax: 0.10.0
libtpu: 0.0.40
codegen_flags: <defaults>
</compile_context>

<pallas_src>
import functools

import jax
import jax.numpy as jnp
import numpy as np
from jax import lax
from jax.experimental import pallas as pl
from jax.experimental.pallas import tpu as pltpu


def _round_up(x, n):
    return ((x + n - 1) // n) * n


def _choose_pack(in_dim, hidden_dim, out_dim):
    """Rows packed per kernel row.  Packing p makes every operand p*dim lanes
    wide (lane-dense for small feature dims) at the cost of p**2-scaled
    block-diagonal weights, so only pack while the packed dims stay small."""
    for p in (8, 4, 2):
        if p * max(in_dim, hidden_dim, out_dim) <= 512:
            return p
    return 1


def _block_diag(w, pack):
    """(fi, fo) -> (pack*fi, pack*fo) block-diagonal expansion (pack==1: w)."""
    if pack == 1:
        return w
    fi, fo = w.shape
    eye = jnp.eye(pack, dtype=w.dtype)
    return (eye[:, None, :, None] * w[None, :, None, :]).reshape(pack * fi, pack * fo)


def _mlp_math(x, w0, b0, w1, b1, wf, bf):
    """Linear -> ReLU -> Linear -> ReLU -> (Dropout = identity) -> Linear.
    Matmuls accumulate in f32 on the MXU; operands keep their storage dtype."""
    h = jnp.dot(x, w0, preferred_element_type=jnp.float32)
    h = jnp.maximum(h + b0.astype(jnp.float32), 0.0)
    h = jnp.dot(h.astype(w1.dtype), w1, preferred_element_type=jnp.float32)
    h = jnp.maximum(h + b1.astype(jnp.float32), 0.0)
    # Dropout(p) in eval mode is identity -> no-op here.
    # TODO(synk): training-mode dropout (pltpu.prng_random_bits keep-mask) not implemented.
    out = jnp.dot(h.astype(wf.dtype), wf, preferred_element_type=jnp.float32)
    return out + bf.astype(jnp.float32)


def _mlp_kernel(x_ref, w0_ref, b0_ref, w1_ref, b1_ref, wf_ref, bf_ref, o_ref):
    out = _mlp_math(x_ref[...], w0_ref[...], b0_ref[...], w1_ref[...],
                    b1_ref[...], wf_ref[...], bf_ref[...])
    o_ref[...] = out.astype(o_ref.dtype)


def _mlp_kernel_masked(x_ref, w0_ref, b0_ref, w1_ref, b1_ref, wf_ref, bf_ref,
                       mask_ref, o_ref, *, out_dim):
    out = _mlp_math(x_ref[...], w0_ref[...], b0_ref[...], w1_ref[...],
                    b1_ref[...], wf_ref[...], bf_ref[...])
    mask = mask_ref[...]
    if mask.shape[-1] == out.shape[-1]:
        # Full mask, already packed lane-dense in the wrapper.
        out = out * mask.astype(jnp.float32)
    else:
        # Per-row mask packed as (rows, pack): expand each entry across its
        # out_dim lane group with a tiny matmul (no wrapper-side broadcast).
        pack, width = mask.shape[-1], out.shape[-1]
        row = lax.broadcasted_iota(jnp.int32, (pack, width), 0)
        grp = lax.broadcasted_iota(jnp.int32, (pack, width), 1) // out_dim
        expand = (row == grp).astype(jnp.float32)
        out = out * jnp.dot(mask.astype(jnp.float32), expand,
                            preferred_element_type=jnp.float32)
    o_ref[...] = out.astype(o_ref.dtype)


def mlp_forward(x, params, mask=None, *, tile_rows=8192):
    """Fused MLP forward.  x: (..., in_dim) -> (..., out_dim).

    params: w0 (in,hid), b0 (1,hid), w1 (hid,hid), b1 (1,hid), wf (hid,out),
    bf (1,out) -- weights stored as (in_features, out_features), i.e. the
    transpose of PyTorch nn.Linear.weight.  mask: broadcastable to (..., out_dim).
    """
    in_dim = x.shape[-1]
    hidden_dim = params["w0"].shape[1]
    out_dim = params["wf"].shape[1]
    lead_shape = x.shape[:-1]
    m = int(np.prod(lead_shape)) if lead_shape else 1
    out_dtype = x.dtype
    itemsize = jnp.dtype(x.dtype).itemsize
    w_itemsize = jnp.dtype(params["w0"].dtype).itemsize

    pack = _choose_pack(in_dim, hidden_dim, out_dim)

    x2 = x.reshape(m, in_dim)

    mask2 = None
    if mask is not None:
        per_row = (mask.ndim == 0) or (mask.shape[-1] == 1)
        if per_row:
            mask2 = jnp.broadcast_to(mask, lead_shape + (1,)).reshape(m, 1)
        else:
            mask2 = jnp.broadcast_to(mask, lead_shape + (out_dim,)).reshape(m, out_dim)
        mask2 = mask2.astype(x.dtype)

    # Pack `pack` consecutive rows into one kernel row (a free, contiguous
    # reshape).  Only pad (a real HBM copy) when m is not a multiple of `pack`;
    # tile-boundary remainders are handled by Pallas partial final blocks, so
    # the common case never copies x or the output.
    m_pad = _round_up(m, pack)
    if m_pad != m:
        x2 = jnp.pad(x2, ((0, m_pad - m), (0, 0)))
        if mask2 is not None:
            mask2 = jnp.pad(mask2, ((0, m_pad - m), (0, 0)))
    rows = m_pad // pack
    xp = x2.reshape(rows, pack * in_dim)
    mp = None if mask2 is None else mask2.reshape(rows, pack * mask2.shape[-1])

    # Block-diagonal ("row packed") weights; with pack == 1 these are the originals.
    w0p = _block_diag(params["w0"], pack)
    w1p = _block_diag(params["w1"], pack)
    wfp = _block_diag(params["wf"], pack)
    b0p = jnp.tile(params["b0"], (1, pack))
    b1p = jnp.tile(params["b1"], (1, pack))
    bfp = jnp.tile(params["bf"], (1, pack))

    # ---- Row-tile policy ---------------------------------------------------
    # Dtype-aware sublane alignment (f32: 8, bf16: 16, int8/fp8: 32 packed rows).
    row_align = max(8, 32 // itemsize)
    max_rows = max(row_align, _round_up(max(1, int(tile_rows) // pack), row_align))

    def lane_pad(n):
        return _round_up(n, 128)

    def buf_bytes(r, c, isz):
        # VMEM buffers are padded to full (sublane, lane) tiles.
        sub = max(8, 32 // isz)
        return _round_up(r, sub) * lane_pad(c) * isz

    w_bytes = (buf_bytes(pack * in_dim, pack * hidden_dim, w_itemsize)
               + buf_bytes(pack * hidden_dim, pack * hidden_dim, w_itemsize)
               + buf_bytes(pack * hidden_dim, pack * out_dim, w_itemsize)
               + 2 * buf_bytes(1, pack * hidden_dim, w_itemsize)
               + buf_bytes(1, pack * out_dim, w_itemsize))
    mask_cols = 0 if mp is None else mp.shape[1]

    def est_vmem(r):
        io = (buf_bytes(r, pack * in_dim, itemsize)
              + buf_bytes(r, pack * out_dim, jnp.dtype(out_dtype).itemsize)
              + (buf_bytes(r, mask_cols, itemsize) if mask_cols else 0))
        # f32 intermediates (two hidden activations + pre-cast output).
        inter = 2 * buf_bytes(r, pack * hidden_dim, 4) + buf_bytes(r, pack * out_dim, 4)
        return 2 * io + 2 * w_bytes + inter + (2 << 20)

    try:  # generation-aware budget (v5e/v6e: 128 MiB physical, v7x: 64 MiB/TC)
        vmem_capacity = int(pltpu.get_tpu_info().vmem_capacity_bytes)
    except Exception:
        vmem_capacity = 64 << 20
    budget = min(int(vmem_capacity * 0.7), 96 << 20)

    if rows <= 2 * row_align:
        block_rows, num_tiles = rows, 1          # single whole-array block
    else:
        block_rows = min(max_rows, _round_up(pl.cdiv(rows, 2), row_align))
        while block_rows > row_align and est_vmem(block_rows) > budget:
            block_rows = max(row_align, _round_up(block_rows // 2, row_align))
        num_tiles = pl.cdiv(rows, block_rows)
        if num_tiles > 1 and num_tiles % 2:
            # Even tile count keeps v7x's two TensorCores balanced.
            num_tiles += 1
            block_rows = max(row_align, _round_up(pl.cdiv(rows, num_tiles), row_align))
            num_tiles = pl.cdiv(rows, block_rows)

    cp_kwargs = dict(dimension_semantics=("parallel",))
    est = est_vmem(block_rows)
    if est > (12 << 20):
        cp_kwargs["vmem_limit_bytes"] = int(min(max(est, 16 << 20), budget))

    # ---- Specs & call --------------------------------------------------------
    def wspec(a):
        # Whole array, constant index_map -> stays VMEM-resident, no re-DMA.
        return pl.BlockSpec(a.shape, lambda i: (0, 0))

    x_spec = pl.BlockSpec((block_rows, pack * in_dim), lambda i: (i, 0))
    out_spec = pl.BlockSpec((block_rows, pack * out_dim), lambda i: (i, 0))
    weight_specs = [wspec(w0p), wspec(b0p), wspec(w1p), wspec(b1p),
                    wspec(wfp), wspec(bfp)]

    if mp is None:
        kernel = _mlp_kernel
        in_specs = [x_spec] + weight_specs
        operands = (xp, w0p, b0p, w1p, b1p, wfp, bfp)
    else:
        kernel = functools.partial(_mlp_kernel_masked, out_dim=out_dim)
        in_specs = [x_spec] + weight_specs + [
            pl.BlockSpec((block_rows, mp.shape[1]), lambda i: (i, 0))]
        operands = (xp, w0p, b0p, w1p, b1p, wfp, bfp, mp)

    outp = pl.pallas_call(
        kernel,
        out_shape=jax.ShapeDtypeStruct((rows, pack * out_dim), out_dtype),
        grid_spec=pltpu.PrefetchScalarGridSpec(
            num_scalar_prefetch=0,
            grid=(num_tiles,),
            in_specs=in_specs,
            out_specs=out_spec,
        ),
        compiler_params=pltpu.CompilerParams(**cp_kwargs),
    )(*operands)

    out2 = outp.reshape(m_pad, out_dim)   # contiguous row-major -> free
    if m_pad != m:
        out2 = out2[:m]
    return out2.reshape(lead_shape + (out_dim,))


def init_params(key, in_dim, hidden_dim, out_dim):
    """nn.Linear default init (uniform +-1/sqrt(fan_in)); final layer zeroed
    exactly as MLP.__init__ does."""
    k0, k1, k2, k3 = jax.random.split(key, 4)

    def lin(kw, kb, fan_in, fan_out):
        bound = 1.0 / np.sqrt(fan_in)
        w = jax.random.uniform(kw, (fan_in, fan_out), jnp.float32, -bound, bound)
        b = jax.random.uniform(kb, (1, fan_out), jnp.float32, -bound, bound)
        return w, b

    w0, b0 = lin(k0, k1, in_dim, hidden_dim)
    w1, b1 = lin(k2, k3, hidden_dim, hidden_dim)
    wf = jnp.zeros((hidden_dim, out_dim), jnp.float32)   # nn.init.zeros_
    bf = jnp.zeros((1, out_dim), jnp.float32)            # nn.init.zeros_
    return dict(w0=w0, b0=b0, w1=w1, b1=b1, wf=wf, bf=bf)


def mlp_ref(x, params, mask=None):
    """Pure-JAX reference with the same dtype flow as the kernel."""
    h = jnp.dot(x, params["w0"], preferred_element_type=jnp.float32)
    h = jnp.maximum(h + params["b0"].astype(jnp.float32), 0.0)
    h = jnp.dot(h.astype(params["w1"].dtype), params["w1"],
                preferred_element_type=jnp.float32)
    h = jnp.maximum(h + params["b1"].astype(jnp.float32), 0.0)
    out = jnp.dot(h.astype(params["wf"].dtype), params["wf"],
                  preferred_element_type=jnp.float32)
    out = out + params["bf"].astype(jnp.float32)
    if mask is not None:
        out = out * mask.astype(jnp.float32)
    return out.astype(x.dtype)


if __name__ == "__main__":
    in_dim, hidden_dim, out_dim = 32, 64, 16
    B, S = 2, 8

    key = jax.random.PRNGKey(0)
    kx, km, kp, kw, kb, kx2, kx3, km3 = jax.random.split(key, 8)

    x = jax.random.normal(kx, (B, S, in_dim), jnp.float32)
    mask = (jax.random.uniform(km, (B, S, out_dim)) > 0.5).astype(jnp.float32)

    # Faithful module init (final layer zeroed).
    params = init_params(kp, in_dim, hidden_dim, out_dim)
    # Non-zero final layer so the full compute path is actually validated.
    bound = 1.0 / np.sqrt(hidden_dim)
    params_nz = dict(params)
    params_nz["wf"] = jax.random.uniform(kw, (hidden_dim, out_dim), jnp.float32, -bound, bound)
    params_nz["bf"] = jax.random.uniform(kb, (1, out_dim), jnp.float32, -bound, bound)

    fwd = jax.jit(mlp_forward)

    # 1) Faithful init (zero final layer), full mask.
    out1 = jax.block_until_ready(fwd(x, params, mask))
    ref1 = mlp_ref(x, params, mask)
    assert out1.shape == (B, S, out_dim)
    np.testing.assert_allclose(np.asarray(out1), np.asarray(ref1), rtol=2e-2, atol=2e-3)

    # 2) Non-zero final layer, full mask (validates matmuls/bias/ReLU/mask).
    out2 = jax.block_until_ready(fwd(x, params_nz, mask))
    ref2 = mlp_ref(x, params_nz, mask)
    np.testing.assert_allclose(np.asarray(out2), np.asarray(ref2), rtol=2e-2, atol=2e-3)

    # 3) No mask + row count not divisible by the packing (exercises the rare pad path).
    x_odd = jax.random.normal(kx2, (3, 67, in_dim), jnp.float32)
    out3 = jax.block_until_ready(fwd(x_odd, params_nz, None))
    ref3 = mlp_ref(x_odd, params_nz, None)
    assert out3.shape == (3, 67, out_dim)
    np.testing.assert_allclose(np.asarray(out3), np.asarray(ref3), rtol=2e-2, atol=2e-3)

    # 4) bf16 inputs/weights (halves HBM traffic), f32 accumulation in-kernel.
    x_bf = x.astype(jnp.bfloat16)
    mask_bf = mask.astype(jnp.bfloat16)
    params_bf = {k: v.astype(jnp.bfloat16) for k, v in params_nz.items()}
    out4 = jax.block_until_ready(fwd(x_bf, params_bf, mask_bf))
    ref4 = mlp_ref(x_bf, params_bf, mask_bf)
    np.testing.assert_allclose(np.asarray(out4, dtype=np.float32),
                               np.asarray(ref4, dtype=np.float32),
                               rtol=5e-2, atol=5e-3)

    # 5) Larger input: multi-tile grid, partial final block (no wrapper pad),
    #    per-row mask (last dim 1) expanded in-kernel.
    x3 = jax.random.normal(kx3, (4, 1030, in_dim), jnp.float32)
    mask3 = (jax.random.uniform(km3, (4, 1030, 1)) > 0.5).astype(jnp.float32)
    out5 = jax.block_until_ready(fwd(x3, params_nz, mask3))
    ref5 = mlp_ref(x3, params_nz, mask3)
    assert out5.shape == (4, 1030, out_dim)
    np.testing.assert_allclose(np.asarray(out5), np.asarray(ref5), rtol=2e-2, atol=2e-3)

    print("KERNEL_OK")
</pallas_src>

<mosaic_0001>
module attributes {stable_mosaic.version = 11 : i64} {
  func.func @_mlp_kernel_masked(%arg0: i32, %arg1: memref<2x256xf32, #tpu.memory_space<vmem>>, %arg2: memref<256x512xf32, #tpu.memory_space<vmem>>, %arg3: memref<1x512xf32, #tpu.memory_space<vmem>>, %arg4: memref<512x512xf32, #tpu.memory_space<vmem>>, %arg5: memref<1x512xf32, #tpu.memory_space<vmem>>, %arg6: memref<512x128xf32, #tpu.memory_space<vmem>>, %arg7: memref<1x128xf32, #tpu.memory_space<vmem>>, %arg8: memref<2x128xf32, #tpu.memory_space<vmem>>, %arg9: memref<2x128xf32, #tpu.memory_space<vmem>>) attributes {dimension_semantics = [#tpu.dimension_semantics<parallel>], iteration_bounds = array<i64: 1>, scalar_prefetch = 0 : i64, scratch_operands = 0 : i64, tpu.core_type = #tpu.core_type<tc>, window_params = [{transform_indices = @transform_0, window_bounds = array<i64: 2, 256>}, {pipeline_mode = #tpu.pipeline_mode<synchronous>, transform_indices = @transform_1, window_bounds = array<i64: 256, 512>}, {pipeline_mode = #tpu.pipeline_mode<synchronous>, transform_indices = @transform_2, window_bounds = array<i64: 1, 512>}, {pipeline_mode = #tpu.pipeline_mode<synchronous>, transform_indices = @transform_3, window_bounds = array<i64: 512, 512>}, {pipeline_mode = #tpu.pipeline_mode<synchronous>, transform_indices = @transform_4, window_bounds = array<i64: 1, 512>}, {pipeline_mode = #tpu.pipeline_mode<synchronous>, transform_indices = @transform_5, window_bounds = array<i64: 512, 128>}, {pipeline_mode = #tpu.pipeline_mode<synchronous>, transform_indices = @transform_6, window_bounds = array<i64: 1, 128>}, {transform_indices = @transform_7, window_bounds = array<i64: 2, 128>}, {transform_indices = @transform_8, window_bounds = array<i64: 2, 128>}]} {
    %c0 = arith.constant 0 : index
    %c0_0 = arith.constant 0 : index
    %0 = vector.load %arg1[%c0, %c0_0] : memref<2x256xf32, #tpu.memory_space<vmem>>, vector<2x256xf32>
    %c0_1 = arith.constant 0 : index
    %c0_2 = arith.constant 0 : index
    %1 = vector.load %arg2[%c0_1, %c0_2] : memref<256x512xf32, #tpu.memory_space<vmem>>, vector<256x512xf32>
    %c0_3 = arith.constant 0 : index
    %c0_4 = arith.constant 0 : index
    %2 = vector.load %arg3[%c0_3, %c0_4] : memref<1x512xf32, #tpu.memory_space<vmem>>, vector<1x512xf32>
    %c0_5 = arith.constant 0 : index
    %c0_6 = arith.constant 0 : index
    %3 = vector.load %arg4[%c0_5, %c0_6] : memref<512x512xf32, #tpu.memory_space<vmem>>, vector<512x512xf32>
    %c0_7 = arith.constant 0 : index
    %c0_8 = arith.constant 0 : index
    %4 = vector.load %arg5[%c0_7, %c0_8] : memref<1x512xf32, #tpu.memory_space<vmem>>, vector<1x512xf32>
    %c0_9 = arith.constant 0 : index
    %c0_10 = arith.constant 0 : index
    %5 = vector.load %arg6[%c0_9, %c0_10] : memref<512x128xf32, #tpu.memory_space<vmem>>, vector<512x128xf32>
    %c0_11 = arith.constant 0 : index
    %c0_12 = arith.constant 0 : index
    %6 = vector.load %arg7[%c0_11, %c0_12] : memref<1x128xf32, #tpu.memory_space<vmem>>, vector<1x128xf32>
    %cst = arith.constant dense<0.000000e+00> : vector<2x512xf32>
    %7 = tpu.matmul %0, %1, %cst {dimension_numbers = #tpu.dot_dimension_numbers<[1], [0], [0], [1], [0, 0, 1, 1], [], []>} : vector<2x256xf32>, vector<256x512xf32>, vector<2x512xf32> -> vector<2x512xf32>
    %8 = vector.broadcast %2 : vector<1x512xf32> to vector<2x512xf32>
    %9 = arith.addf %7, %8 : vector<2x512xf32>
    %cst_13 = arith.constant 0.000000e+00 : f32
    %10 = vector.broadcast %cst_13 : f32 to vector<2x512xf32>
    %11 = arith.maximumf %9, %10 : vector<2x512xf32>
    %cst_14 = arith.constant dense<0.000000e+00> : vector<2x512xf32>
    %12 = tpu.matmul %11, %3, %cst_14 {dimension_numbers = #tpu.dot_dimension_numbers<[1], [0], [0], [1], [0, 0, 1, 1], [], []>} : vector<2x512xf32>, vector<512x512xf32>, vector<2x512xf32> -> vector<2x512xf32>
    %13 = vector.broadcast %4 : vector<1x512xf32> to vector<2x512xf32>
    %14 = arith.addf %12, %13 : vector<2x512xf32>
    %cst_15 = arith.constant 0.000000e+00 : f32
    %15 = vector.broadcast %cst_15 : f32 to vector<2x512xf32>
    %16 = arith.maximumf %14, %15 : vector<2x512xf32>
    %cst_16 = arith.constant dense<0.000000e+00> : vector<2x128xf32>
    %17 = tpu.matmul %16, %5, %cst_16 {dimension_numbers = #tpu.dot_dimension_numbers<[1], [0], [0], [1], [0, 0, 1, 1], [], []>} : vector<2x512xf32>, vector<512x128xf32>, vector<2x128xf32> -> vector<2x128xf32>
    %18 = vector.broadcast %6 : vector<1x128xf32> to vector<2x128xf32>
    %19 = arith.addf %17, %18 : vector<2x128xf32>
    %c0_17 = arith.constant 0 : index
    %c0_18 = arith.constant 0 : index
    %20 = vector.load %arg8[%c0_17, %c0_18] : memref<2x128xf32, #tpu.memory_space<vmem>>, vector<2x128xf32>
    %21 = arith.mulf %19, %20 : vector<2x128xf32>
    %c0_19 = arith.constant 0 : index
    %c0_20 = arith.constant 0 : index
    %22 = vector.load %arg9[%c0_19, %c0_20] : memref<2x128xf32, #tpu.memory_space<vmem>>, vector<2x128xf32>
    tpu.vector_store %arg9[%c0_19, %c0_20], %21 {strides = array<i32>} : memref<2x128xf32, #tpu.memory_space<vmem>>, vector<2x128xf32>,
    return
  }
  func.func @transform_0(%arg0: i32) -> (i32, i32) {
    %c0_i32 = arith.constant 0 : i32
    %c0_i32_0 = arith.constant 0 : i32
    return %arg0, %c0_i32 : i32, i32
  }
  func.func @transform_1(%arg0: i32) -> (i32, i32) {
    %c0_i32 = arith.constant 0 : i32
    %c0_i32_0 = arith.constant 0 : i32
    %c0_i32_1 = arith.constant 0 : i32
    return %c0_i32, %c0_i32_0 : i32, i32
  }
  func.func @transform_2(%arg0: i32) -> (i32, i32) {
    %c0_i32 = arith.constant 0 : i32
    %c0_i32_0 = arith.constant 0 : i32
    %c0_i32_1 = arith.constant 0 : i32
    return %c0_i32, %c0_i32_0 : i32, i32
  }
  func.func @transform_3(%arg0: i32) -> (i32, i32) {
    %c0_i32 = arith.constant 0 : i32
    %c0_i32_0 = arith.constant 0 : i32
    %c0_i32_1 = arith.constant 0 : i32
    return %c0_i32, %c0_i32_0 : i32, i32
  }
  func.func @transform_4(%arg0: i32) -> (i32, i32) {
    %c0_i32 = arith.constant 0 : i32
    %c0_i32_0 = arith.constant 0 : i32
    %c0_i32_1 = arith.constant 0 : i32
    return %c0_i32, %c0_i32_0 : i32, i32
  }
  func.func @transform_5(%arg0: i32) -> (i32, i32) {
    %c0_i32 = arith.constant 0 : i32
    %c0_i32_0 = arith.constant 0 : i32
    %c0_i32_1 = arith.constant 0 : i32
    return %c0_i32, %c0_i32_0 : i32, i32
  }
  func.func @transform_6(%arg0: i32) -> (i32, i32) {
    %c0_i32 = arith.constant 0 : i32
    %c0_i32_0 = arith.constant 0 : i32
    %c0_i32_1 = arith.constant 0 : i32
    return %c0_i32, %c0_i32_0 : i32, i32
  }
  func.func @transform_7(%arg0: i32) -> (i32, i32) {
    %c0_i32 = arith.constant 0 : i32
    %c0_i32_0 = arith.constant 0 : i32
    return %arg0, %c0_i32 : i32, i32
  }
  func.func @transform_8(%arg0: i32) -> (i32, i32) {
    %c0_i32 = arith.constant 0 : i32
    %c0_i32_0 = arith.constant 0 : i32
    return %arg0, %c0_i32 : i32, i32
  }
}

</mosaic_0001>

<llo_original>
// kernel: mlp_forward.1
$region0: #{mlp_forward.1}
  #allocation0 [shape = 'u32[]', space=smem, size = 0x4, offset = 0x4, fixed_abs, tag = 'smem constant byte address 0x4 - core index']
  #allocation1 [shape = 'u32[144,128]{1,0:T(1,128)}', space=vmem, size = 0x12000, scoped, tag = 'internal scratch']
  %s0 = inlined_call_operand.vmem [shape: f32[2,256], index: 0, kind: input, shape index: {}]
  %s1 = inlined_call_operand.vmem [shape: f32[256,512], index: 1, kind: input, shape index: {}]
  %s2 = inlined_call_operand.vmem [shape: f32[1,512], index: 2, kind: input, shape index: {}]
  %s3 = inlined_call_operand.vmem [shape: f32[512,512], index: 3, kind: input, shape index: {}]
  %s4 = inlined_call_operand.vmem [shape: f32[1,512], index: 4, kind: input, shape index: {}]
  %s5 = inlined_call_operand.vmem [shape: f32[512,128], index: 5, kind: input, shape index: {}]
  %s6 = inlined_call_operand.vmem [shape: f32[1,128], index: 6, kind: input, shape index: {}]
  %s7 = inlined_call_operand.vmem [shape: f32[2,128], index: 7, kind: input, shape index: {}]
  %s8 = inlined_call_operand.vmem [shape: f32[2,128], index: 8, kind: output, shape index: {}]
  %s9 = sld [smem:[#allocation0]]
  $region42: #{mlp_forward.1} parent=0
    _
  %s11 = ssub.s32 1, %s9
  %s12 = scalar_select 0, %s11, %s9
  // Predicated region
  $region2: #{mlp_forward.1} parent=0 // pred_check
    _
  $region3: #{mlp_forward.1} parent=0 // pred_check_branch
    %14 = sbr.rel (0) target = $region5
  $region4: #{mlp_forward.1} parent=0 // pred_region
    _
  $region5: #{mlp_forward.1} parent=0 // pred_fallthru
    _
  // Predicated region
  $region6: #{mlp_forward.1} parent=0 // pred_check
    _
  $region7: #{mlp_forward.1} parent=0 // pred_check_branch
    %16 = sbr.rel (0) target = $region9
  $region8: #{mlp_forward.1} parent=0 // pred_region
    _
  $region9: #{mlp_forward.1} parent=0 // pred_fallthru
    _
  // Predicated region
  $region10: #{mlp_forward.1} parent=0 // pred_check
    _
  $region11: #{mlp_forward.1} parent=0 // pred_check_branch
    %18 = sbr.rel (0) target = $region13
  $region12: #{mlp_forward.1} parent=0 // pred_region
    _
  $region13: #{mlp_forward.1} parent=0 // pred_fallthru
    _
  // Predicated region
  $region14: #{mlp_forward.1} parent=0 // pred_check
    _
  $region15: #{mlp_forward.1} parent=0 // pred_check_branch
    %20 = sbr.rel (0) target = $region17
  $region16: #{mlp_forward.1} parent=0 // pred_region
    _
  $region17: #{mlp_forward.1} parent=0 // pred_fallthru
    _
  // Predicated region
  $region18: #{mlp_forward.1} parent=0 // pred_check
    _
  $region19: #{mlp_forward.1} parent=0 // pred_check_branch
    %22 = sbr.rel (0) target = $region21
  $region20: #{mlp_forward.1} parent=0 // pred_region
    _
  $region21: #{mlp_forward.1} parent=0 // pred_fallthru
    _
  // Predicated region
  $region22: #{mlp_forward.1} parent=0 // pred_check
    _
  $region23: #{mlp_forward.1} parent=0 // pred_check_branch
    %24 = sbr.rel (0) target = $region25
  $region24: #{mlp_forward.1} parent=0 // pred_region
    _
  $region25: #{mlp_forward.1} parent=0 // pred_fallthru
    _
  // Predicated region
  $region26: #{mlp_forward.1} parent=0 // pred_check
    _
  $region27: #{mlp_forward.1} parent=0 // pred_check_branch
    %26 = sbr.rel (0) target = $region29
  $region28: #{mlp_forward.1} parent=0 // pred_region
    _
  $region29: #{mlp_forward.1} parent=0 // pred_fallthru
    _
  // Predicated region
  $region30: #{mlp_forward.1} parent=0 // pred_check
    _
  $region31: #{mlp_forward.1} parent=0 // pred_check_branch
    %28 = sbr.rel (0) target = $region33
  $region32: #{mlp_forward.1} parent=0 // pred_region
    _
  $region33: #{mlp_forward.1} parent=0 // pred_fallthru
    _
  %v29 = vld [vmem:[%s0] sm:$0xf]
  %v30 = vld [vmem:[%s1] sm:$0xff]
  %v31 = vld [vmem:[%s1 + $0x8] sm:$0xff]
  %v32 = vld [vmem:[%s1 + $0x10] sm:$0xff]
  %v33 = vld [vmem:[%s1 + $0x18] sm:$0xff]
  %v34 = vld [vmem:[%s1 + $0x20] sm:$0xff]
  %v35 = vld [vmem:[%s1 + $0x28] sm:$0xff]
  %v36 = vld [vmem:[%s1 + $0x30] sm:$0xff]
  %v37 = vld [vmem:[%s1 + $0x38] sm:$0xff]
  %v38 = vld [vmem:[%s1 + $0x40] sm:$0xff]
  %v39 = vld [vmem:[%s1 + $0x48] sm:$0xff]
  %v40 = vld [vmem:[%s1 + $0x50] sm:$0xff]
  %v41 = vld [vmem:[%s1 + $0x58] sm:$0xff]
  %v42 = vld [vmem:[%s1 + $0x60] sm:$0xff]
  %v43 = vld [vmem:[%s1 + $0x68] sm:$0xff]
  %v44 = vld [vmem:[%s1 + $0x70] sm:$0xff]
  %v45 = vld [vmem:[%s1 + $0x78] sm:$0xff]
  %v46 = vld [vmem:[%s1 + $0x80] sm:$0xff]
  %v47 = vld [vmem:[%s1 + $0x88] sm:$0xff]
  %v48 = vld [vmem:[%s1 + $0x90] sm:$0xff]
  %v49 = vld [vmem:[%s1 + $0x98] sm:$0xff]
  %v50 = vld [vmem:[%s1 + $0xa0] sm:$0xff]
  %v51 = vld [vmem:[%s1 + $0xa8] sm:$0xff]
  %v52 = vld [vmem:[%s1 + $0xb0] sm:$0xff]
  %v53 = vld [vmem:[%s1 + $0xb8] sm:$0xff]
  %v54 = vld [vmem:[%s1 + $0xc0] sm:$0xff]
  %v55 = vld [vmem:[%s1 + $0xc8] sm:$0xff]
  %v56 = vld [vmem:[%s1 + $0xd0] sm:$0xff]
  %v57 = vld [vmem:[%s1 + $0xd8] sm:$0xff]
  %v58 = vld [vmem:[%s1 + $0xe0] sm:$0xff]
  %v59 = vld [vmem:[%s1 + $0xe8] sm:$0xff]
  %v60 = vld [vmem:[%s1 + $0xf0] sm:$0xff]
  %v61 = vld [vmem:[%s1 + $0xf8] sm:$0xff]
  %v62 = vld [vmem:[%s1 + $0x100] sm:$0xff]
  %v63 = vld [vmem:[%s1 + $0x108] sm:$0xff]
  %v64 = vld [vmem:[%s1 + $0x110] sm:$0xff]
  %v65 = vld [vmem:[%s1 + $0x118] sm:$0xff]
  %v66 = vld [vmem:[%s1 + $0x120] sm:$0xff]
  %v67 = vld [vmem:[%s1 + $0x128] sm:$0xff]
  %v68 = vld [vmem:[%s1 + $0x130] sm:$0xff]
  %v69 = vld [vmem:[%s1 + $0x138] sm:$0xff]
  %v70 = vld [vmem:[%s1 + $0x140] sm:$0xff]
  %v71 = vld [vmem:[%s1 + $0x148] sm:$0xff]
  %v72 = vld [vmem:[%s1 + $0x150] sm:$0xff]
  %v73 = vld [vmem:[%s1 + $0x158] sm:$0xff]
  %v74 = vld [vmem:[%s1 + $0x160] sm:$0xff]
  %v75 = vld [vmem:[%s1 + $0x168] sm:$0xff]
  %v76 = vld [vmem:[%s1 + $0x170] sm:$0xff]
  %v77 = vld [vmem:[%s1 + $0x178] sm:$0xff]
  %v78 = vld [vmem:[%s1 + $0x180] sm:$0xff]
  %v79 = vld [vmem:[%s1 + $0x188] sm:$0xff]
  %v80 = vld [vmem:[%s1 + $0x190] sm:$0xff]
  %v81 = vld [vmem:[%s1 + $0x198] sm:$0xff]
  %v82 = vld [vmem:[%s1 + $0x1a0] sm:$0xff]
  %v83 = vld [vmem:[%s1 + $0x1a8] sm:$0xff]
  %v84 = vld [vmem:[%s1 + $0x1b0] sm:$0xff]
  %v85 = vld [vmem:[%s1 + $0x1b8] sm:$0xff]
  %v86 = vld [vmem:[%s1 + $0x1c0] sm:$0xff]
  %v87 = vld [vmem:[%s1 + $0x1c8] sm:$0xff]
  %v88 = vld [vmem:[%s1 + $0x1d0] sm:$0xff]
  %v89 = vld [vmem:[%s1 + $0x1d8] sm:$0xff]
  %v90 = vld [vmem:[%s1 + $0x1e0] sm:$0xff]
  %v91 = vld [vmem:[%s1 + $0x1e8] sm:$0xff]
  %v92 = vld [vmem:[%s1 + $0x1f0] sm:$0xff]
  %v93 = vld [vmem:[%s1 + $0x1f8] sm:$0xff]
  %v94 = vld [vmem:[%s1 + $0x200] sm:$0xff]
  %v95 = vld [vmem:[%s1 + $0x208] sm:$0xff]
  %v96 = vld [vmem:[%s1 + $0x210] sm:$0xff]
  %v97 = vld [vmem:[%s1 + $0x218] sm:$0xff]
  %v98 = vld [vmem:[%s1 + $0x220] sm:$0xff]
  %v99 = vld [vmem:[%s1 + $0x228] sm:$0xff]
  %v100 = vld [vmem:[%s1 + $0x230] sm:$0xff]
  %v101 = vld [vmem:[%s1 + $0x238] sm:$0xff]
  %v102 = vld [vmem:[%s1 + $0x240] sm:$0xff]
  %v103 = vld [vmem:[%s1 + $0x248] sm:$0xff]
  %v104 = vld [vmem:[%s1 + $0x250] sm:$0xff]
  %v105 = vld [vmem:[%s1 + $0x258] sm:$0xff]
  %v106 = vld [vmem:[%s1 + $0x260] sm:$0xff]
  %v107 = vld [vmem:[%s1 + $0x268] sm:$0xff]
  %v108 = vld [vmem:[%s1 + $0x270] sm:$0xff]
  %v109 = vld [vmem:[%s1 + $0x278] sm:$0xff]
  %v110 = vld [vmem:[%s1 + $0x280] sm:$0xff]
  %v111 = vld [vmem:[%s1 + $0x288] sm:$0xff]
  %v112 = vld [vmem:[%s1 + $0x290] sm:$0xff]
  %v113 = vld [vmem:[%s1 + $0x298] sm:$0xff]
  %v114 = vld [vmem:[%s1 + $0x2a0] sm:$0xff]
  %v115 = vld [vmem:[%s1 + $0x2a8] sm:$0xff]
  %v116 = vld [vmem:[%s1 + $0x2b0] sm:$0xff]
  %v117 = vld [vmem:[%s1 + $0x2b8] sm:$0xff]
  %v118 = vld [vmem:[%s1 + $0x2c0] sm:$0xff]
  %v119 = vld [vmem:[%s1 + $0x2c8] sm:$0xff]
  %v120 = vld [vmem:[%s1 + $0x2d0] sm:$0xff]
  %v121 = vld [vmem:[%s1 + $0x2d8] sm:$0xff]
  %v122 = vld [vmem:[%s1 + $0x2e0] sm:$0xff]
  %v123 = vld [vmem:[%s1 + $0x2e8] sm:$0xff]
  %v124 = vld [vmem:[%s1 + $0x2f0] sm:$0xff]
  %v125 = vld [vmem:[%s1 + $0x2f8] sm:$0xff]
  %v126 = vld [vmem:[%s1 + $0x300] sm:$0xff]
  %v127 = vld [vmem:[%s1 + $0x308] sm:$0xff]
  %v128 = vld [vmem:[%s1 + $0x310] sm:$0xff]
  %v129 = vld [vmem:[%s1 + $0x318] sm:$0xff]
  %v130 = vld [vmem:[%s1 + $0x320] sm:$0xff]
  %v131 = vld [vmem:[%s1 + $0x328] sm:$0xff]
  %v132 = vld [vmem:[%s1 + $0x330] sm:$0xff]
  %v133 = vld [vmem:[%s1 + $0x338] sm:$0xff]
  %v134 = vld [vmem:[%s1 + $0x340] sm:$0xff]
  %v135 = vld [vmem:[%s1 + $0x348] sm:$0xff]
  %v136 = vld [vmem:[%s1 + $0x350] sm:$0xff]
  %v137 = vld [vmem:[%s1 + $0x358] sm:$0xff]
  %v138 = vld [vmem:[%s1 + $0x360] sm:$0xff]
  %v139 = vld [vmem:[%s1 + $0x368] sm:$0xff]
  %v140 = vld [vmem:[%s1 + $0x370] sm:$0xff]
  %v141 = vld [vmem:[%s1 + $0x378] sm:$0xff]
  %v142 = vld [vmem:[%s1 + $0x380] sm:$0xff]
  %v143 = vld [vmem:[%s1 + $0x388] sm:$0xff]
  %v144 = vld [vmem:[%s1 + $0x390] sm:$0xff]
  %v145 = vld [vmem:[%s1 + $0x398] sm:$0xff]
  %v146 = vld [vmem:[%s1 + $0x3a0] sm:$0xff]
  %v147 = vld [vmem:[%s1 + $0x3a8] sm:$0xff]
  %v148 = vld [vmem:[%s1 + $0x3b0] sm:$0xff]
  %v149 = vld [vmem:[%s1 + $0x3b8] sm:$0xff]
  %v150 = vld [vmem:[%s1 + $0x3c0] sm:$0xff]
  %v151 = vld [vmem:[%s1 + $0x3c8] sm:$0xff]
  %v152 = vld [vmem:[%s1 + $0x3d0] sm:$0xff]
  %v153 = vld [vmem:[%s1 + $0x3d8] sm:$0xff]
  %v154 = vld [vmem:[%s1 + $0x3e0] sm:$0xff]
  %v155 = vld [vmem:[%s1 + $0x3e8] sm:$0xff]
  %v156 = vld [vmem:[%s1 + $0x3f0] sm:$0xff]
  %v157 = vld [vmem:[%s1 + $0x3f8] sm:$0xff]
  %v158 = vld [vmem:[%s2] sm:$0xf]
  %v159 = vld [vmem:[%s3] sm:$0xff]
  %v160 = vld [vmem:[%s3 + $0x8] sm:$0xff]
  %v161 = vld [vmem:[%s3 + $0x10] sm:$0xff]
  %v162 = vld [vmem:[%s3 + $0x18] sm:$0xff]
  %v163 = vld [vmem:[%s3 + $0x20] sm:$0xff]
  %v164 = vld [vmem:[%s3 + $0x28] sm:$0xff]
  %v165 = vld [vmem:[%s3 + $0x30] sm:$0xff]
  %v166 = vld [vmem:[%s3 + $0x38] sm:$0xff]
  %v167 = vld [vmem:[%s3 + $0x40] sm:$0xff]
  %v168 = vld [vmem:[%s3 + $0x48] sm:$0xff]
  %v169 = vld [vmem:[%s3 + $0x50] sm:$0xff]
  %v170 = vld [vmem:[%s3 + $0x58] sm:$0xff]
  %v171 = vld [vmem:[%s3 + $0x60] sm:$0xff]
  %v172 = vld [vmem:[%s3 + $0x68] sm:$0xff]
  %v173 = vld [vmem:[%s3 + $0x70] sm:$0xff]
  %v174 = vld [vmem:[%s3 + $0x78] sm:$0xff]
  %v175 = vld [vmem:[%s3 + $0x80] sm:$0xff]
  %v176 = vld [vmem:[%s3 + $0x88] sm:$0xff]
  %v177 = vld [vmem:[%s3 + $0x90] sm:$0xff]
  %v178 = vld [vmem:[%s3 + $0x98] sm:$0xff]
  %v179 = vld [vmem:[%s3 + $0xa0] sm:$0xff]
  %v180 = vld [vmem:[%s3 + $0xa8] sm:$0xff]
  %v181 = vld [vmem:[%s3 + $0xb0] sm:$0xff]
  %v182 = vld [vmem:[%s3 + $0xb8] sm:$0xff]
  %v183 = vld [vmem:[%s3 + $0xc0] sm:$0xff]
  %v184 = vld [vmem:[%s3 + $0xc8] sm:$0xff]
  %v185 = vld [vmem:[%s3 + $0xd0] sm:$0xff]
  %v186 = vld [vmem:[%s3 + $0xd8] sm:$0xff]
  %v187 = vld [vmem:[%s3 + $0xe0] sm:$0xff]
  %v188 = vld [vmem:[%s3 + $0xe8] sm:$0xff]
  %v189 = vld [vmem:[%s3 + $0xf0] sm:$0xff]
  %v190 = vld [vmem:[%s3 + $0xf8] sm:$0xff]
  %v191 = vld [vmem:[%s3 + $0x100] sm:$0xff]
  %v192 = vld [vmem:[%s3 + $0x108] sm:$0xff]
  %v193 = vld [vmem:[%s3 + $0x110] sm:$0xff]
  %v194 = vld [vmem:[%s3 + $0x118] sm:$0xff]
  %v195 = vld [vmem:[%s3 + $0x120] sm:$0xff]
  %v196 = vld [vmem:[%s3 + $0x128] sm:$0xff]
  %v197 = vld [vmem:[%s3 + $0x130] sm:$0xff]
  %v198 = vld [vmem:[%s3 + $0x138] sm:$0xff]
  %v199 = vld [vmem:[%s3 + $0x140] sm:$0xff]
  %v200 = vld [vmem:[%s3 + $0x148] sm:$0xff]
  %v201 = vld [vmem:[%s3 + $0x150] sm:$0xff]
  %v202 = vld [vmem:[%s3 + $0x158] sm:$0xff]
  %v203 = vld [vmem:[%s3 + $0x160] sm:$0xff]
  %v204 = vld [vmem:[%s3 + $0x168] sm:$0xff]
  %v205 = vld [vmem:[%s3 + $0x170] sm:$0xff]
  %v206 = vld [vmem:[%s3 + $0x178] sm:$0xff]
  %v207 = vld [vmem:[%s3 + $0x180] sm:$0xff]
  %v208 = vld [vmem:[%s3 + $0x188] sm:$0xff]
  %v209 = vld [vmem:[%s3 + $0x190] sm:$0xff]
  %v210 = vld [vmem:[%s3 + $0x198] sm:$0xff]
  %v211 = vld [vmem:[%s3 + $0x1a0] sm:$0xff]
  %v212 = vld [vmem:[%s3 + $0x1a8] sm:$0xff]
  %v213 = vld [vmem:[%s3 + $0x1b0] sm:$0xff]
  %v214 = vld [vmem:[%s3 + $0x1b8] sm:$0xff]
  %v215 = vld [vmem:[%s3 + $0x1c0] sm:$0xff]
  %v216 = vld [vmem:[%s3 + $0x1c8] sm:$0xff]
  %v217 = vld [vmem:[%s3 + $0x1d0] sm:$0xff]
  %v218 = vld [vmem:[%s3 + $0x1d8] sm:$0xff]
  %v219 = vld [vmem:[%s3 + $0x1e0] sm:$0xff]
  %v220 = vld [vmem:[%s3 + $0x1e8] sm:$0xff]
  %v221 = vld [vmem:[%s3 + $0x1f0] sm:$0xff]
  %v222 = vld [vmem:[%s3 + $0x1f8] sm:$0xff]
  %v223 = vld [vmem:[%s3 + $0x200] sm:$0xff]
  %v224 = vld [vmem:[%s3 + $0x208] sm:$0xff]
  %v225 = vld [vmem:[%s3 + $0x210] sm:$0xff]
  %v226 = vld [vmem:[%s3 + $0x218] sm:$0xff]
  %v227 = vld [vmem:[%s3 + $0x220] sm:$0xff]
  %v228 = vld [vmem:[%s3 + $0x228] sm:$0xff]
  %v229 = vld [vmem:[%s3 + $0x230] sm:$0xff]
  %v230 = vld [vmem:[%s3 + $0x238] sm:$0xff]
  %v231 = vld [vmem:[%s3 + $0x240] sm:$0xff]
  %v232 = vld [vmem:[%s3 + $0x248] sm:$0xff]
  %v233 = vld [vmem:[%s3 + $0x250] sm:$0xff]
  %v234 = vld [vmem:[%s3 + $0x258] sm:$0xff]
  %v235 = vld [vmem:[%s3 + $0x260] sm:$0xff]
  %v236 = vld [vmem:[%s3 + $0x268] sm:$0xff]
  %v237 = vld [vmem:[%s3 + $0x270] sm:$0xff]
  %v238 = vld [vmem:[%s3 + $0x278] sm:$0xff]
  %v239 = vld [vmem:[%s3 + $0x280] sm:$0xff]
  %v240 = vld [vmem:[%s3 + $0x288] sm:$0xff]
  %v241 = vld [vmem:[%s3 + $0x290] sm:$0xff]
  %v242 = vld [vmem:[%s3 + $0x298] sm:$0xff]
  %v243 = vld [vmem:[%s3 + $0x2a0] sm:$0xff]
  %v244 = vld [vmem:[%s3 + $0x2a8] sm:$0xff]
  %v245 = vld [vmem:[%s3 + $0x2b0] sm:$0xff]
  %v246 = vld [vmem:[%s3 + $0x2b8] sm:$0xff]
  %v247 = vld [vmem:[%s3 + $0x2c0] sm:$0xff]
  %v248 = vld [vmem:[%s3 + $0x2c8] sm:$0xff]
  %v249 = vld [vmem:[%s3 + $0x2d0] sm:$0xff]
  %v250 = vld [vmem:[%s3 + $0x2d8] sm:$0xff]
  %v251 = vld [vmem:[%s3 + $0x2e0] sm:$0xff]
  %v252 = vld [vmem:[%s3 + $0x2e8] sm:$0xff]
  %v253 = vld [vmem:[%s3 + $0x2f0] sm:$0xff]
  %v254 = vld [vmem:[%s3 + $0x2f8] sm:$0xff]
  %v255 = vld [vmem:[%s3 + $0x300] sm:$0xff]
  %v256 = vld [vmem:[%s3 + $0x308] sm:$0xff]
  %v257 = vld [vmem:[%s3 + $0x310] sm:$0xff]
  %v258 = vld [vmem:[%s3 + $0x318] sm:$0xff]
  %v259 = vld [vmem:[%s3 + $0x320] sm:$0xff]
  %v260 = vld [vmem:[%s3 + $0x328] sm:$0xff]
  %v261 = vld [vmem:[%s3 + $0x330] sm:$0xff]
  %v262 = vld [vmem:[%s3 + $0x338] sm:$0xff]
  %v263 = vld [vmem:[%s3 + $0x340] sm:$0xff]
  %v264 = vld [vmem:[%s3 + $0x348] sm:$0xff]
  %v265 = vld [vmem:[%s3 + $0x350] sm:$0xff]
  %v266 = vld [vmem:[%s3 + $0x358] sm:$0xff]
  %v267 = vld [vmem:[%s3 + $0x360] sm:$0xff]
  %v268 = vld [vmem:[%s3 + $0x368] sm:$0xff]
  %v269 = vld [vmem:[%s3 + $0x370] sm:$0xff]
  %v270 = vld [vmem:[%s3 + $0x378] sm:$0xff]
  %v271 = vld [vmem:[%s3 + $0x380] sm:$0xff]
  %v272 = vld [vmem:[%s3 + $0x388] sm:$0xff]
  %v273 = vld [vmem:[%s3 + $0x390] sm:$0xff]
  %v274 = vld [vmem:[%s3 + $0x398] sm:$0xff]
  %v275 = vld [vmem:[%s3 + $0x3a0] sm:$0xff]
  %v276 = vld [vmem:[%s3 + $0x3a8] sm:$0xff]
  %v277 = vld [vmem:[%s3 + $0x3b0] sm:$0xff]
  %v278 = vld [vmem:[%s3 + $0x3b8] sm:$0xff]
  %v279 = vld [vmem:[%s3 + $0x3c0] sm:$0xff]
  %v280 = vld [vmem:[%s3 + $0x3c8] sm:$0xff]
  %v281 = vld [vmem:[%s3 + $0x3d0] sm:$0xff]
  %v282 = vld [vmem:[%s3 + $0x3d8] sm:$0xff]
  %v283 = vld [vmem:[%s3 + $0x3e0] sm:$0xff]
  %v284 = vld [vmem:[%s3 + $0x3e8] sm:$0xff]
  %v285 = vld [vmem:[%s3 + $0x3f0] sm:$0xff]
  %v286 = vld [vmem:[%s3 + $0x3f8] sm:$0xff]
  %v287 = vld [vmem:[%s3 + $0x400] sm:$0xff]
  %v288 = vld [vmem:[%s3 + $0x408] sm:$0xff]
  %v289 = vld [vmem:[%s3 + $0x410] sm:$0xff]
  %v290 = vld [vmem:[%s3 + $0x418] sm:$0xff]
  %v291 = vld [vmem:[%s3 + $0x420] sm:$0xff]
  %v292 = vld [vmem:[%s3 + $0x428] sm:$0xff]
  %v293 = vld [vmem:[%s3 + $0x430] sm:$0xff]
  %v294 = vld [vmem:[%s3 + $0x438] sm:$0xff]
  %v295 = vld [vmem:[%s3 + $0x440] sm:$0xff]
  %v296 = vld [vmem:[%s3 + $0x448] sm:$0xff]
  %v297 = vld [vmem:[%s3 + $0x450] sm:$0xff]
  %v298 = vld [vmem:[%s3 + $0x458] sm:$0xff]
  %v299 = vld [vmem:[%s3 + $0x460] sm:$0xff]
  %v300 = vld [vmem:[%s3 + $0x468] sm:$0xff]
  %v301 = vld [vmem:[%s3 + $0x470] sm:$0xff]
  %v302 = vld [vmem:[%s3 + $0x478] sm:$0xff]
  %v303 = vld [vmem:[%s3 + $0x480] sm:$0xff]
  %v304 = vld [vmem:[%s3 + $0x488] sm:$0xff]
  %v305 = vld [vmem:[%s3 + $0x490] sm:$0xff]
  %v306 = vld [vmem:[%s3 + $0x498] sm:$0xff]
  %v307 = vld [vmem:[%s3 + $0x4a0] sm:$0xff]
  %v308 = vld [vmem:[%s3 + $0x4a8] sm:$0xff]
  %v309 = vld [vmem:[%s3 + $0x4b0] sm:$0xff]
  %v310 = vld [vmem:[%s3 + $0x4b8] sm:$0xff]
  %v311 = vld [vmem:[%s3 + $0x4c0] sm:$0xff]
  %v312 = vld [vmem:[%s3 + $0x4c8] sm:$0xff]
  %v313 = vld [vmem:[%s3 + $0x4d0] sm:$0xff]
  %v314 = vld [vmem:[%s3 + $0x4d8] sm:$0xff]
  %v315 = vld [vmem:[%s3 + $0x4e0] sm:$0xff]
  %v316 = vld [vmem:[%s3 + $0x4e8] sm:$0xff]
  %v317 = vld [vmem:[%s3 + $0x4f0] sm:$0xff]
  %v318 = vld [vmem:[%s3 + $0x4f8] sm:$0xff]
  %v319 = vld [vmem:[%s3 + $0x500] sm:$0xff]
  %v320 = vld [vmem:[%s3 + $0x508] sm:$0xff]
  %v321 = vld [vmem:[%s3 + $0x510] sm:$0xff]
  %v322 = vld [vmem:[%s3 + $0x518] sm:$0xff]
  %v323 = vld [vmem:[%s3 + $0x520] sm:$0xff]
  %v324 = vld [vmem:[%s3 + $0x528] sm:$0xff]
  %v325 = vld [vmem:[%s3 + $0x530] sm:$0xff]
  %v326 = vld [vmem:[%s3 + $0x538] sm:$0xff]
  %v327 = vld [vmem:[%s3 + $0x540] sm:$0xff]
  %v328 = vld [vmem:[%s3 + $0x548] sm:$0xff]
  %v329 = vld [vmem:[%s3 + $0x550] sm:$0xff]
  %v330 = vld [vmem:[%s3 + $0x558] sm:$0xff]
  %v331 = vld [vmem:[%s3 + $0x560] sm:$0xff]
  %v332 = vld [vmem:[%s3 + $0x568] sm:$0xff]
  %v333 = vld [vmem:[%s3 + $0x570] sm:$0xff]
  %v334 = vld [vmem:[%s3 + $0x578] sm:$0xff]
  %v335 = vld [vmem:[%s3 + $0x580] sm:$0xff]
  %v336 = vld [vmem:[%s3 + $0x588] sm:$0xff]
  %v337 = vld [vmem:[%s3 + $0x590] sm:$0xff]
  %v338 = vld [vmem:[%s3 + $0x598] sm:$0xff]
  %v339 = vld [vmem:[%s3 + $0x5a0] sm:$0xff]
  %v340 = vld [vmem:[%s3 + $0x5a8] sm:$0xff]
  %v341 = vld [vmem:[%s3 + $0x5b0] sm:$0xff]
  %v342 = vld [vmem:[%s3 + $0x5b8] sm:$0xff]
  %v343 = vld [vmem:[%s3 + $0x5c0] sm:$0xff]
  %v344 = vld [vmem:[%s3 + $0x5c8] sm:$0xff]
  %v345 = vld [vmem:[%s3 + $0x5d0] sm:$0xff]
  %v346 = vld [vmem:[%s3 + $0x5d8] sm:$0xff]
  %v347 = vld [vmem:[%s3 + $0x5e0] sm:$0xff]
  %v348 = vld [vmem:[%s3 + $0x5e8] sm:$0xff]
  %v349 = vld [vmem:[%s3 + $0x5f0] sm:$0xff]
  %v350 = vld [vmem:[%s3 + $0x5f8] sm:$0xff]
  %v351 = vld [vmem:[%s3 + $0x600] sm:$0xff]
  %v352 = vld [vmem:[%s3 + $0x608] sm:$0xff]
  %v353 = vld [vmem:[%s3 + $0x610] sm:$0xff]
  %v354 = vld [vmem:[%s3 + $0x618] sm:$0xff]
  %v355 = vld [vmem:[%s3 + $0x620] sm:$0xff]
  %v356 = vld [vmem:[%s3 + $0x628] sm:$0xff]
  %v357 = vld [vmem:[%s3 + $0x630] sm:$0xff]
  %v358 = vld [vmem:[%s3 + $0x638] sm:$0xff]
  %v359 = vld [vmem:[%s3 + $0x640] sm:$0xff]
  %v360 = vld [vmem:[%s3 + $0x648] sm:$0xff]
  %v361 = vld [vmem:[%s3 + $0x650] sm:$0xff]
  %v362 = vld [vmem:[%s3 + $0x658] sm:$0xff]
  %v363 = vld [vmem:[%s3 + $0x660] sm:$0xff]
  %v364 = vld [vmem:[%s3 + $0x668] sm:$0xff]
  %v365 = vld [vmem:[%s3 + $0x670] sm:$0xff]
  %v366 = vld [vmem:[%s3 + $0x678] sm:$0xff]
  %v367 = vld [vmem:[%s3 + $0x680] sm:$0xff]
  %v368 = vld [vmem:[%s3 + $0x688] sm:$0xff]
  %v369 = vld [vmem:[%s3 + $0x690] sm:$0xff]
  %v370 = vld [vmem:[%s3 + $0x698] sm:$0xff]
  %v371 = vld [vmem:[%s3 + $0x6a0] sm:$0xff]
  %v372 = vld [vmem:[%s3 + $0x6a8] sm:$0xff]
  %v373 = vld [vmem:[%s3 + $0x6b0] sm:$0xff]
  %v374 = vld [vmem:[%s3 + $0x6b8] sm:$0xff]
  %v375 = vld [vmem:[%s3 + $0x6c0] sm:$0xff]
  %v376 = vld [vmem:[%s3 + $0x6c8] sm:$0xff]
  %v377 = vld [vmem:[%s3 + $0x6d0] sm:$0xff]
  %v378 = vld [vmem:[%s3 + $0x6d8] sm:$0xff]
  %v379 = vld [vmem:[%s3 + $0x6e0] sm:$0xff]
  %v380 = vld [vmem:[%s3 + $0x6e8] sm:$0xff]
  %v381 = vld [vmem:[%s3 + $0x6f0] sm:$0xff]
  %v382 = vld [vmem:[%s3 + $0x6f8] sm:$0xff]
  %v383 = vld [vmem:[%s3 + $0x700] sm:$0xff]
  %v384 = vld [vmem:[%s3 + $0x708] sm:$0xff]
  %v385 = vld [vmem:[%s3 + $0x710] sm:$0xff]
  %v386 = vld [vmem:[%s3 + $0x718] sm:$0xff]
  %v387 = vld [vmem:[%s3 + $0x720] sm:$0xff]
  %v388 = vld [vmem:[%s3 + $0x728] sm:$0xff]
  %v389 = vld [vmem:[%s3 + $0x730] sm:$0xff]
  %v390 = vld [vmem:[%s3 + $0x738] sm:$0xff]
  %v391 = vld [vmem:[%s3 + $0x740] sm:$0xff]
  %v392 = vld [vmem:[%s3 + $0x748] sm:$0xff]
  %v393 = vld [vmem:[%s3 + $0x750] sm:$0xff]
  %v394 = vld [vmem:[%s3 + $0x758] sm:$0xff]
  %v395 = vld [vmem:[%s3 + $0x760] sm:$0xff]
  %v396 = vld [vmem:[%s3 + $0x768] sm:$0xff]
  %v397 = vld [vmem:[%s3 + $0x770] sm:$0xff]
  %v398 = vld [vmem:[%s3 + $0x778] sm:$0xff]
  %v399 = vld [vmem:[%s3 + $0x780] sm:$0xff]
  %v400 = vld [vmem:[%s3 + $0x788] sm:$0xff]
  %v401 = vld [vmem:[%s3 + $0x790] sm:$0xff]
  %v402 = vld [vmem:[%s3 + $0x798] sm:$0xff]
  %v403 = vld [vmem:[%s3 + $0x7a0] sm:$0xff]
  %v404 = vld [vmem:[%s3 + $0x7a8] sm:$0xff]
  %v405 = vld [vmem:[%s3 + $0x7b0] sm:$0xff]
  %v406 = vld [vmem:[%s3 + $0x7b8] sm:$0xff]
  %v407 = vld [vmem:[%s3 + $0x7c0] sm:$0xff]
  %v408 = vld [vmem:[%s3 + $0x7c8] sm:$0xff]
  %v409 = vld [vmem:[%s3 + $0x7d0] sm:$0xff]
  %v410 = vld [vmem:[%s3 + $0x7d8] sm:$0xff]
  %v411 = vld [vmem:[%s3 + $0x7e0] sm:$0xff]
  %v412 = vld [vmem:[%s3 + $0x7e8] sm:$0xff]
  %v413 = vld [vmem:[%s3 + $0x7f0] sm:$0xff]
  %v414 = vld [vmem:[%s3 + $0x7f8] sm:$0xff]
  %v415 = vld [vmem:[%s4] sm:$0xf]
  %v416 = vld [vmem:[%s5] sm:$0xff]
  %v417 = vld [vmem:[%s5 + $0x8] sm:$0xff]
  %v418 = vld [vmem:[%s5 + $0x10] sm:$0xff]
  %v419 = vld [vmem:[%s5 + $0x18] sm:$0xff]
  %v420 = vld [vmem:[%s5 + $0x20] sm:$0xff]
  %v421 = vld [vmem:[%s5 + $0x28] sm:$0xff]
  %v422 = vld [vmem:[%s5 + $0x30] sm:$0xff]
  %v423 = vld [vmem:[%s5 + $0x38] sm:$0xff]
  %v424 = vld [vmem:[%s5 + $0x40] sm:$0xff]
  %v425 = vld [vmem:[%s5 + $0x48] sm:$0xff]
  %v426 = vld [vmem:[%s5 + $0x50] sm:$0xff]
  %v427 = vld [vmem:[%s5 + $0x58] sm:$0xff]
  %v428 = vld [vmem:[%s5 + $0x60] sm:$0xff]
  %v429 = vld [vmem:[%s5 + $0x68] sm:$0xff]
  %v430 = vld [vmem:[%s5 + $0x70] sm:$0xff]
  %v431 = vld [vmem:[%s5 + $0x78] sm:$0xff]
  %v432 = vld [vmem:[%s5 + $0x80] sm:$0xff]
  %v433 = vld [vmem:[%s5 + $0x88] sm:$0xff]
  %v434 = vld [vmem:[%s5 + $0x90] sm:$0xff]
  %v435 = vld [vmem:[%s5 + $0x98] sm:$0xff]
  %v436 = vld [vmem:[%s5 + $0xa0] sm:$0xff]
  %v437 = vld [vmem:[%s5 + $0xa8] sm:$0xff]
  %v438 = vld [vmem:[%s5 + $0xb0] sm:$0xff]
  %v439 = vld [vmem:[%s5 + $0xb8] sm:$0xff]
  %v440 = vld [vmem:[%s5 + $0xc0] sm:$0xff]
  %v441 = vld [vmem:[%s5 + $0xc8] sm:$0xff]
  %v442 = vld [vmem:[%s5 + $0xd0] sm:$0xff]
  %v443 = vld [vmem:[%s5 + $0xd8] sm:$0xff]
  %v444 = vld [vmem:[%s5 + $0xe0] sm:$0xff]
  %v445 = vld [vmem:[%s5 + $0xe8] sm:$0xff]
  %v446 = vld [vmem:[%s5 + $0xf0] sm:$0xff]
  %v447 = vld [vmem:[%s5 + $0xf8] sm:$0xff]
  %v448 = vld [vmem:[%s5 + $0x100] sm:$0xff]
  %v449 = vld [vmem:[%s5 + $0x108] sm:$0xff]
  %v450 = vld [vmem:[%s5 + $0x110] sm:$0xff]
  %v451 = vld [vmem:[%s5 + $0x118] sm:$0xff]
  %v452 = vld [vmem:[%s5 + $0x120] sm:$0xff]
  %v453 = vld [vmem:[%s5 + $0x128] sm:$0xff]
  %v454 = vld [vmem:[%s5 + $0x130] sm:$0xff]
  %v455 = vld [vmem:[%s5 + $0x138] sm:$0xff]
  %v456 = vld [vmem:[%s5 + $0x140] sm:$0xff]
  %v457 = vld [vmem:[%s5 + $0x148] sm:$0xff]
  %v458 = vld [vmem:[%s5 + $0x150] sm:$0xff]
  %v459 = vld [vmem:[%s5 + $0x158] sm:$0xff]
  %v460 = vld [vmem:[%s5 + $0x160] sm:$0xff]
  %v461 = vld [vmem:[%s5 + $0x168] sm:$0xff]
  %v462 = vld [vmem:[%s5 + $0x170] sm:$0xff]
  %v463 = vld [vmem:[%s5 + $0x178] sm:$0xff]
  %v464 = vld [vmem:[%s5 + $0x180] sm:$0xff]
  %v465 = vld [vmem:[%s5 + $0x188] sm:$0xff]
  %v466 = vld [vmem:[%s5 + $0x190] sm:$0xff]
  %v467 = vld [vmem:[%s5 + $0x198] sm:$0xff]
  %v468 = vld [vmem:[%s5 + $0x1a0] sm:$0xff]
  %v469 = vld [vmem:[%s5 + $0x1a8] sm:$0xff]
  %v470 = vld [vmem:[%s5 + $0x1b0] sm:$0xff]
  %v471 = vld [vmem:[%s5 + $0x1b8] sm:$0xff]
  %v472 = vld [vmem:[%s5 + $0x1c0] sm:$0xff]
  %v473 = vld [vmem:[%s5 + $0x1c8] sm:$0xff]
  %v474 = vld [vmem:[%s5 + $0x1d0] sm:$0xff]
  %v475 = vld [vmem:[%s5 + $0x1d8] sm:$0xff]
  %v476 = vld [vmem:[%s5 + $0x1e0] sm:$0xff]
  %v477 = vld [vmem:[%s5 + $0x1e8] sm:$0xff]
  %v478 = vld [vmem:[%s5 + $0x1f0] sm:$0xff]
  %v479 = vld [vmem:[%s5 + $0x1f8] sm:$0xff]
  %v480 = vld [vmem:[%s6] sm:$0x1]
  %v482 = vlaneseq
  %v483 = vshrl.u32 %v482, 7
  %v484 = vsub.s32 0, %v483
  %v485 = vrot.slane %v158, %v484
  %v486 = vlaneseq
  %v487 = vshrl.u32 %v486, 7
  %v488 = vsub.s32 1, %v487
  %v489 = vrot.slane %v158, %v488
  %v490 = vlaneseq
  %v491 = vshrl.u32 %v490, 7
  %v492 = vsub.s32 2, %v491
  %v493 = vrot.slane %v158, %v492
  %v494 = vlaneseq
  %v495 = vshrl.u32 %v494, 7
  %v496 = vsub.s32 3, %v495
  %v497 = vrot.slane %v158, %v496
  %v504 = vunpack.c.l.s4 1983009808
  %v505 = vunpack.c.0.s8 %v504
  %v506 = vlaneseq
  %v507 = vshrl.u32 %v506, 7
  %v508 = vsub.s32 %v505, %v507
  %v509 = vrot.slane %v29, %v508
  %v510 = vcombine.high %v509, %v509
  %513 = vmatprep.subr.mxu0 %v91
  %514 = vmatpush1.msra.mxu0 %v90
  %515 = vmatprep.subr.mxu0 %v87
  %516 = vmatpush1.msra.mxu0 %v86
  %517 = vmatprep.subr.mxu0 %v83
  %518 = vmatpush1.msra.mxu0 %v82
  %519 = vmatprep.subr.mxu0 %v79
  %520 = vmatpush1.msra.mxu0 %v78
  %521 = vmatprep.subr.mxu0 %v75
  %522 = vmatpush1.msra.mxu0 %v74
  %523 = vmatprep.subr.mxu0 %v71
  %524 = vmatpush1.msra.mxu0 %v70
  %525 = vmatprep.subr.mxu0 %v67
  %526 = vmatpush1.msra.mxu0 %v66
  %527 = vmatprep.subr.mxu0 %v63
  %528 = vmatpush1.msra.mxu0 %v62
  %529 = vmatprep.subr.mxu0 %v59
  %530 = vmatpush1.msra.mxu0 %v58
  %531 = vmatprep.subr.mxu0 %v55
  %532 = vmatpush1.msra.mxu0 %v54
  %533 = vmatprep.subr.mxu0 %v51
  %534 = vmatpush1.msra.mxu0 %v50
  %535 = vmatprep.subr.mxu0 %v47
  %536 = vmatpush1.msra.mxu0 %v46
  %537 = vmatprep.subr.mxu0 %v43
  %538 = vmatpush1.msra.mxu0 %v42
  %539 = vmatprep.subr.mxu0 %v39
  %540 = vmatpush1.msra.mxu0 %v38
  %541 = vmatprep.subr.mxu0 %v35
  %542 = vmatpush1.msra.mxu0 %v34
  %543 = vmatprep.subr.mxu0 %v31
  %544 = vmatpush1.msra.mxu0 %v30
  %545 = vmatprep.subr.mxu0 %v155
  %546 = vmatpush2.msra.mxu0 %v154
  %547 = vmatprep.subr.mxu0 %v151
  %548 = vmatpush2.msra.mxu0 %v150
  %549 = vmatprep.subr.mxu0 %v147
  %550 = vmatpush2.msra.mxu0 %v146
  %551 = vmatprep.subr.mxu0 %v143
  %552 = vmatpush2.msra.mxu0 %v142
  %553 = vmatprep.subr.mxu0 %v139
  %554 = vmatpush2.msra.mxu0 %v138
  %555 = vmatprep.subr.mxu0 %v135
  %556 = vmatpush2.msra.mxu0 %v134
  %557 = vmatprep.subr.mxu0 %v131
  %558 = vmatpush2.msra.mxu0 %v130
  %559 = vmatprep.subr.mxu0 %v127
  %560 = vmatpush2.msra.mxu0 %v126
  %561 = vmatprep.subr.mxu0 %v123
  %562 = vmatpush2.msra.mxu0 %v122
  %563 = vmatprep.subr.mxu0 %v119
  %564 = vmatpush2.msra.mxu0 %v118
  %565 = vmatprep.subr.mxu0 %v115
  %566 = vmatpush2.msra.mxu0 %v114
  %567 = vmatprep.subr.mxu0 %v111
  %568 = vmatpush2.msra.mxu0 %v110
  %569 = vmatprep.subr.mxu0 %v107
  %570 = vmatpush2.msra.mxu0 %v106
  %571 = vmatprep.subr.mxu0 %v103
  %572 = vmatpush2.msra.mxu0 %v102
  %573 = vmatprep.subr.mxu0 %v99
  %574 = vmatpush2.msra.mxu0 %v98
  %575 = vmatprep.subr.mxu0 %v95
  %576 = vmatpush2.msra.mxu0 %v94
  %577 = vmatprep.mubr.f32.mxu0 %v510
  %578 = vmatmul.mubr.f32.gmra.mxu0 %v509
  %v579 = vpop.f32.mrf.mxu0
  %v580 = vadd.f32 %v485, %v579
  %v581 = vpop.f32.mrf.mxu0
  %v582 = vadd.f32 %v489, %v581
  %583 = vdwg.mxu0
  %584 = vmatprep.subr.mxu0 %v93
  %585 = vmatpush1.msra.mxu0 %v92
  %586 = vmatprep.subr.mxu0 %v89
  %587 = vmatpush1.msra.mxu0 %v88
  %588 = vmatprep.subr.mxu0 %v85
  %589 = vmatpush1.msra.mxu0 %v84
  %590 = vmatprep.subr.mxu0 %v81
  %591 = vmatpush1.msra.mxu0 %v80
  %592 = vmatprep.subr.mxu0 %v77
  %593 = vmatpush1.msra.mxu0 %v76
  %594 = vmatprep.subr.mxu0 %v73
  %595 = vmatpush1.msra.mxu0 %v72
  %596 = vmatprep.subr.mxu0 %v69
  %597 = vmatpush1.msra.mxu0 %v68
  %598 = vmatprep.subr.mxu0 %v65
  %599 = vmatpush1.msra.mxu0 %v64
  %600 = vmatprep.subr.mxu0 %v61
  %601 = vmatpush1.msra.mxu0 %v60
  %602 = vmatprep.subr.mxu0 %v57
  %603 = vmatpush1.msra.mxu0 %v56
  %604 = vmatprep.subr.mxu0 %v53
  %605 = vmatpush1.msra.mxu0 %v52
  %606 = vmatprep.subr.mxu0 %v49
  %607 = vmatpush1.msra.mxu0 %v48
  %608 = vmatprep.subr.mxu0 %v45
  %609 = vmatpush1.msra.mxu0 %v44
  %610 = vmatprep.subr.mxu0 %v41
  %611 = vmatpush1.msra.mxu0 %v40
  %612 = vmatprep.subr.mxu0 %v37
  %613 = vmatpush1.msra.mxu0 %v36
  %614 = vmatprep.subr.mxu0 %v33
  %615 = vmatpush1.msra.mxu0 %v32
  %616 = vmatprep.subr.mxu0 %v157
  %617 = vmatpush2.msra.mxu0 %v156
  %618 = vmatprep.subr.mxu0 %v153
  %619 = vmatpush2.msra.mxu0 %v152
  %620 = vmatprep.subr.mxu0 %v149
  %621 = vmatpush2.msra.mxu0 %v148
  %622 = vmatprep.subr.mxu0 %v145
  %623 = vmatpush2.msra.mxu0 %v144
  %624 = vmatprep.subr.mxu0 %v141
  %625 = vmatpush2.msra.mxu0 %v140
  %626 = vmatprep.subr.mxu0 %v137
  %627 = vmatpush2.msra.mxu0 %v136
  %628 = vmatprep.subr.mxu0 %v133
  %629 = vmatpush2.msra.mxu0 %v132
  %630 = vmatprep.subr.mxu0 %v129
  %631 = vmatpush2.msra.mxu0 %v128
  %632 = vmatprep.subr.mxu0 %v125
  %633 = vmatpush2.msra.mxu0 %v124
  %634 = vmatprep.subr.mxu0 %v121
  %635 = vmatpush2.msra.mxu0 %v120
  %636 = vmatprep.subr.mxu0 %v117
  %637 = vmatpush2.msra.mxu0 %v116
  %638 = vmatprep.subr.mxu0 %v113
  %639 = vmatpush2.msra.mxu0 %v112
  %640 = vmatprep.subr.mxu0 %v109
  %641 = vmatpush2.msra.mxu0 %v108
  %642 = vmatprep.subr.mxu0 %v105
  %643 = vmatpush2.msra.mxu0 %v104
  %644 = vmatprep.subr.mxu0 %v101
  %645 = vmatpush2.msra.mxu0 %v100
  %646 = vmatprep.subr.mxu0 %v97
  %647 = vmatpush2.msra.mxu0 %v96
  %648 = vmatprep.mubr.f32.mxu0 %v510
  %649 = vmatmul.mubr.f32.gmra.mxu0 %v509
  %v650 = vpop.f32.mrf.mxu0
  %v651 = vadd.f32 %v493, %v650
  %v652 = vpop.f32.mrf.mxu0
  %v653 = vadd.f32 %v497, %v652
  %654 = vdwg.mxu0
  %v655 = vmax.f32 %v580, 0.0
  %v656 = vmax.f32 %v582, 0.0
  %v657 = vmax.f32 %v651, 0.0
  %v658 = vmax.f32 %v653, 0.0
  %v660 = vlaneseq
  %v661 = vshrl.u32 %v660, 7
  %v662 = vsub.s32 0, %v661
  %v663 = vrot.slane %v415, %v662
  %v664 = vlaneseq
  %v665 = vshrl.u32 %v664, 7
  %v666 = vsub.s32 1, %v665
  %v667 = vrot.slane %v415, %v666
  %v668 = vlaneseq
  %v669 = vshrl.u32 %v668, 7
  %v670 = vsub.s32 2, %v669
  %v671 = vrot.slane %v415, %v670
  %v672 = vlaneseq
  %v673 = vshrl.u32 %v672, 7
  %v674 = vsub.s32 3, %v673
  %v675 = vrot.slane %v415, %v674
  %680 = vmatprep.subr.mxu0 %v220
  %681 = vmatpush1.msra.mxu0 %v219
  %682 = vmatprep.subr.mxu0 %v216
  %683 = vmatpush1.msra.mxu0 %v215
  %684 = vmatprep.subr.mxu0 %v212
  %685 = vmatpush1.msra.mxu0 %v211
  %686 = vmatprep.subr.mxu0 %v208
  %687 = vmatpush1.msra.mxu0 %v207
  %688 = vmatprep.subr.mxu0 %v204
  %689 = vmatpush1.msra.mxu0 %v203
  %690 = vmatprep.subr.mxu0 %v200
  %691 = vmatpush1.msra.mxu0 %v199
  %692 = vmatprep.subr.mxu0 %v196
  %693 = vmatpush1.msra.mxu0 %v195
  %694 = vmatprep.subr.mxu0 %v192
  %695 = vmatpush1.msra.mxu0 %v191
  %696 = vmatprep.subr.mxu0 %v188
  %697 = vmatpush1.msra.mxu0 %v187
  %698 = vmatprep.subr.mxu0 %v184
  %699 = vmatpush1.msra.mxu0 %v183
  %700 = vmatprep.subr.mxu0 %v180
  %701 = vmatpush1.msra.mxu0 %v179
  %702 = vmatprep.subr.mxu0 %v176
  %703 = vmatpush1.msra.mxu0 %v175
  %704 = vmatprep.subr.mxu0 %v172
  %705 = vmatpush1.msra.mxu0 %v171
  %706 = vmatprep.subr.mxu0 %v168
  %707 = vmatpush1.msra.mxu0 %v167
  %708 = vmatprep.subr.mxu0 %v164
  %709 = vmatpush1.msra.mxu0 %v163
  %710 = vmatprep.subr.mxu0 %v160
  %711 = vmatpush1.msra.mxu0 %v159
  %712 = vmatprep.subr.mxu0 %v284
  %713 = vmatpush2.msra.mxu0 %v283
  %714 = vmatprep.subr.mxu0 %v280
  %715 = vmatpush2.msra.mxu0 %v279
  %716 = vmatprep.subr.mxu0 %v276
  %717 = vmatpush2.msra.mxu0 %v275
  %718 = vmatprep.subr.mxu0 %v272
  %719 = vmatpush2.msra.mxu0 %v271
  %720 = vmatprep.subr.mxu0 %v268
  %721 = vmatpush2.msra.mxu0 %v267
  %722 = vmatprep.subr.mxu0 %v264
  %723 = vmatpush2.msra.mxu0 %v263
  %724 = vmatprep.subr.mxu0 %v260
  %725 = vmatpush2.msra.mxu0 %v259
  %726 = vmatprep.subr.mxu0 %v256
  %727 = vmatpush2.msra.mxu0 %v255
  %728 = vmatprep.subr.mxu0 %v252
  %729 = vmatpush2.msra.mxu0 %v251
  %730 = vmatprep.subr.mxu0 %v248
  %731 = vmatpush2.msra.mxu0 %v247
  %732 = vmatprep.subr.mxu0 %v244
  %733 = vmatpush2.msra.mxu0 %v243
  %734 = vmatprep.subr.mxu0 %v240
  %735 = vmatpush2.msra.mxu0 %v239
  %736 = vmatprep.subr.mxu0 %v236
  %737 = vmatpush2.msra.mxu0 %v235
  %738 = vmatprep.subr.mxu0 %v232
  %739 = vmatpush2.msra.mxu0 %v231
  %740 = vmatprep.subr.mxu0 %v228
  %741 = vmatpush2.msra.mxu0 %v227
  %742 = vmatprep.subr.mxu0 %v224
  %743 = vmatpush2.msra.mxu0 %v223
  %744 = vmatprep.mubr.f32.mxu0 %v656
  %745 = vmatmul.mubr.f32.gmra.mxu0 %v655
  %v746 = vpop.f32.mrf.mxu0
  %v747 = vadd.f32 %v663, %v746
  %v748 = vpop.f32.mrf.mxu0
  %v749 = vadd.f32 %v667, %v748
  %750 = vdwg.mxu0
  %751 = vmatprep.subr.mxu0 %v348
  %752 = vmatpush1.msra.mxu0 %v347
  %753 = vmatprep.subr.mxu0 %v344
  %754 = vmatpush1.msra.mxu0 %v343
  %755 = vmatprep.subr.mxu0 %v340
  %756 = vmatpush1.msra.mxu0 %v339
  %757 = vmatprep.subr.mxu0 %v336
  %758 = vmatpush1.msra.mxu0 %v335
  %759 = vmatprep.subr.mxu0 %v332
  %760 = vmatpush1.msra.mxu0 %v331
  %761 = vmatprep.subr.mxu0 %v328
  %762 = vmatpush1.msra.mxu0 %v327
  %763 = vmatprep.subr.mxu0 %v324
  %764 = vmatpush1.msra.mxu0 %v323
  %765 = vmatprep.subr.mxu0 %v320
  %766 = vmatpush1.msra.mxu0 %v319
  %767 = vmatprep.subr.mxu0 %v316
  %768 = vmatpush1.msra.mxu0 %v315
  %769 = vmatprep.subr.mxu0 %v312
  %770 = vmatpush1.msra.mxu0 %v311
  %771 = vmatprep.subr.mxu0 %v308
  %772 = vmatpush1.msra.mxu0 %v307
  %773 = vmatprep.subr.mxu0 %v304
  %774 = vmatpush1.msra.mxu0 %v303
  %775 = vmatprep.subr.mxu0 %v300
  %776 = vmatpush1.msra.mxu0 %v299
  %777 = vmatprep.subr.mxu0 %v296
  %778 = vmatpush1.msra.mxu0 %v295
  %779 = vmatprep.subr.mxu0 %v292
  %780 = vmatpush1.msra.mxu0 %v291
  %781 = vmatprep.subr.mxu0 %v288
  %782 = vmatpush1.msra.mxu0 %v287
  %783 = vmatprep.subr.mxu0 %v412
  %784 = vmatpush2.msra.mxu0 %v411
  %785 = vmatprep.subr.mxu0 %v408
  %786 = vmatpush2.msra.mxu0 %v407
  %787 = vmatprep.subr.mxu0 %v404
  %788 = vmatpush2.msra.mxu0 %v403
  %789 = vmatprep.subr.mxu0 %v400
  %790 = vmatpush2.msra.mxu0 %v399
  %791 = vmatprep.subr.mxu0 %v396
  %792 = vmatpush2.msra.mxu0 %v395
  %793 = vmatprep.subr.mxu0 %v392
  %794 = vmatpush2.msra.mxu0 %v391
  %795 = vmatprep.subr.mxu0 %v388
  %796 = vmatpush2.msra.mxu0 %v387
  %797 = vmatprep.subr.mxu0 %v384
  %798 = vmatpush2.msra.mxu0 %v383
  %799 = vmatprep.subr.mxu0 %v380
  %800 = vmatpush2.msra.mxu0 %v379
  %801 = vmatprep.subr.mxu0 %v376
  %802 = vmatpush2.msra.mxu0 %v375
  %803 = vmatprep.subr.mxu0 %v372
  %804 = vmatpush2.msra.mxu0 %v371
  %805 = vmatprep.subr.mxu0 %v368
  %806 = vmatpush2.msra.mxu0 %v367
  %807 = vmatprep.subr.mxu0 %v364
  %808 = vmatpush2.msra.mxu0 %v363
  %809 = vmatprep.subr.mxu0 %v360
  %810 = vmatpush2.msra.mxu0 %v359
  %811 = vmatprep.subr.mxu0 %v356
  %812 = vmatpush2.msra.mxu0 %v355
  %813 = vmatprep.subr.mxu0 %v352
  %814 = vmatpush2.msra.mxu0 %v351
  %815 = vmatprep.mubr.f32.mxu0 %v658
  %816 = vmatmul.mubr.f32.gmra.mxu0 %v657
  %v817 = vpop.f32.mrf.mxu0
  %v818 = vadd.f32 %v747, %v817
  %v819 = vpop.f32.mrf.mxu0
  %v820 = vadd.f32 %v749, %v819
  %821 = vdwg.mxu0
  %822 = vmatprep.subr.mxu0 %v222
  %823 = vmatpush1.msra.mxu0 %v221
  %824 = vmatprep.subr.mxu0 %v218
  %825 = vmatpush1.msra.mxu0 %v217
  %826 = vmatprep.subr.mxu0 %v214
  %827 = vmatpush1.msra.mxu0 %v213
  %828 = vmatprep.subr.mxu0 %v210
  %829 = vmatpush1.msra.mxu0 %v209
  %830 = vmatprep.subr.mxu0 %v206
  %831 = vmatpush1.msra.mxu0 %v205
  %832 = vmatprep.subr.mxu0 %v202
  %833 = vmatpush1.msra.mxu0 %v201
  %834 = vmatprep.subr.mxu0 %v198
  %835 = vmatpush1.msra.mxu0 %v197
  %836 = vmatprep.subr.mxu0 %v194
  %837 = vmatpush1.msra.mxu0 %v193
  %838 = vmatprep.subr.mxu0 %v190
  %839 = vmatpush1.msra.mxu0 %v189
  %840 = vmatprep.subr.mxu0 %v186
  %841 = vmatpush1.msra.mxu0 %v185
  %842 = vmatprep.subr.mxu0 %v182
  %843 = vmatpush1.msra.mxu0 %v181
  %844 = vmatprep.subr.mxu0 %v178
  %845 = vmatpush1.msra.mxu0 %v177
  %846 = vmatprep.subr.mxu0 %v174
  %847 = vmatpush1.msra.mxu0 %v173
  %848 = vmatprep.subr.mxu0 %v170
  %849 = vmatpush1.msra.mxu0 %v169
  %850 = vmatprep.subr.mxu0 %v166
  %851 = vmatpush1.msra.mxu0 %v165
  %852 = vmatprep.subr.mxu0 %v162
  %853 = vmatpush1.msra.mxu0 %v161
  %854 = vmatprep.subr.mxu0 %v286
  %855 = vmatpush2.msra.mxu0 %v285
  %856 = vmatprep.subr.mxu0 %v282
  %857 = vmatpush2.msra.mxu0 %v281
  %858 = vmatprep.subr.mxu0 %v278
  %859 = vmatpush2.msra.mxu0 %v277
  %860 = vmatprep.subr.mxu0 %v274
  %861 = vmatpush2.msra.mxu0 %v273
  %862 = vmatprep.subr.mxu0 %v270
  %863 = vmatpush2.msra.mxu0 %v269
  %864 = vmatprep.subr.mxu0 %v266
  %865 = vmatpush2.msra.mxu0 %v265
  %866 = vmatprep.subr.mxu0 %v262
  %867 = vmatpush2.msra.mxu0 %v261
  %868 = vmatprep.subr.mxu0 %v258
  %869 = vmatpush2.msra.mxu0 %v257
  %870 = vmatprep.subr.mxu0 %v254
  %871 = vmatpush2.msra.mxu0 %v253
  %872 = vmatprep.subr.mxu0 %v250
  %873 = vmatpush2.msra.mxu0 %v249
  %874 = vmatprep.subr.mxu0 %v246
  %875 = vmatpush2.msra.mxu0 %v245
  %876 = vmatprep.subr.mxu0 %v242
  %877 = vmatpush2.msra.mxu0 %v241
  %878 = vmatprep.subr.mxu0 %v238
  %879 = vmatpush2.msra.mxu0 %v237
  %880 = vmatprep.subr.mxu0 %v234
  %881 = vmatpush2.msra.mxu0 %v233
  %882 = vmatprep.subr.mxu0 %v230
  %883 = vmatpush2.msra.mxu0 %v229
  %884 = vmatprep.subr.mxu0 %v226
  %885 = vmatpush2.msra.mxu0 %v225
  %886 = vmatprep.mubr.f32.mxu0 %v656
  %887 = vmatmul.mubr.f32.gmra.mxu0 %v655
  %v888 = vpop.f32.mrf.mxu0
  %v889 = vadd.f32 %v671, %v888
  %v890 = vpop.f32.mrf.mxu0
  %v891 = vadd.f32 %v675, %v890
  %892 = vdwg.mxu0
  %893 = vmatprep.subr.mxu0 %v350
  %894 = vmatpush1.msra.mxu0 %v349
  %895 = vmatprep.subr.mxu0 %v346
  %896 = vmatpush1.msra.mxu0 %v345
  %897 = vmatprep.subr.mxu0 %v342
  %898 = vmatpush1.msra.mxu0 %v341
  %899 = vmatprep.subr.mxu0 %v338
  %900 = vmatpush1.msra.mxu0 %v337
  %901 = vmatprep.subr.mxu0 %v334
  %902 = vmatpush1.msra.mxu0 %v333
  %903 = vmatprep.subr.mxu0 %v330
  %904 = vmatpush1.msra.mxu0 %v329
  %905 = vmatprep.subr.mxu0 %v326
  %906 = vmatpush1.msra.mxu0 %v325
  %907 = vmatprep.subr.mxu0 %v322
  %908 = vmatpush1.msra.mxu0 %v321
  %909 = vmatprep.subr.mxu0 %v318
  %910 = vmatpush1.msra.mxu0 %v317
  %911 = vmatprep.subr.mxu0 %v314
  %912 = vmatpush1.msra.mxu0 %v313
  %913 = vmatprep.subr.mxu0 %v310
  %914 = vmatpush1.msra.mxu0 %v309
  %915 = vmatprep.subr.mxu0 %v306
  %916 = vmatpush1.msra.mxu0 %v305
  %917 = vmatprep.subr.mxu0 %v302
  %918 = vmatpush1.msra.mxu0 %v301
  %919 = vmatprep.subr.mxu0 %v298
  %920 = vmatpush1.msra.mxu0 %v297
  %921 = vmatprep.subr.mxu0 %v294
  %922 = vmatpush1.msra.mxu0 %v293
  %923 = vmatprep.subr.mxu0 %v290
  %924 = vmatpush1.msra.mxu0 %v289
  %925 = vmatprep.subr.mxu0 %v414
  %926 = vmatpush2.msra.mxu0 %v413
  %927 = vmatprep.subr.mxu0 %v410
  %928 = vmatpush2.msra.mxu0 %v409
  %929 = vmatprep.subr.mxu0 %v406
  %930 = vmatpush2.msra.mxu0 %v405
  %931 = vmatprep.subr.mxu0 %v402
  %932 = vmatpush2.msra.mxu0 %v401
  %933 = vmatprep.subr.mxu0 %v398
  %934 = vmatpush2.msra.mxu0 %v397
  %935 = vmatprep.subr.mxu0 %v394
  %936 = vmatpush2.msra.mxu0 %v393
  %937 = vmatprep.subr.mxu0 %v390
  %938 = vmatpush2.msra.mxu0 %v389
  %939 = vmatprep.subr.mxu0 %v386
  %940 = vmatpush2.msra.mxu0 %v385
  %941 = vmatprep.subr.mxu0 %v382
  %942 = vmatpush2.msra.mxu0 %v381
  %943 = vmatprep.subr.mxu0 %v378
  %944 = vmatpush2.msra.mxu0 %v377
  %945 = vmatprep.subr.mxu0 %v374
  %946 = vmatpush2.msra.mxu0 %v373
  %947 = vmatprep.subr.mxu0 %v370
  %948 = vmatpush2.msra.mxu0 %v369
  %949 = vmatprep.subr.mxu0 %v366
  %950 = vmatpush2.msra.mxu0 %v365
  %951 = vmatprep.subr.mxu0 %v362
  %952 = vmatpush2.msra.mxu0 %v361
  %953 = vmatprep.subr.mxu0 %v358
  %954 = vmatpush2.msra.mxu0 %v357
  %955 = vmatprep.subr.mxu0 %v354
  %956 = vmatpush2.msra.mxu0 %v353
  %957 = vmatprep.mubr.f32.mxu0 %v658
  %958 = vmatmul.mubr.f32.gmra.mxu0 %v657
  %v959 = vpop.f32.mrf.mxu0
  %v960 = vadd.f32 %v889, %v959
  %v961 = vpop.f32.mrf.mxu0
  %v962 = vadd.f32 %v891, %v961
  %963 = vdwg.mxu0
  %v964 = vmax.f32 %v818, 0.0
  %v965 = vmax.f32 %v820, 0.0
  %v966 = vmax.f32 %v960, 0.0
  %v967 = vmax.f32 %v962, 0.0
  %v969 = vlaneseq
  %v970 = vshrl.u32 %v969, 7
  %v971 = vsub.s32 0, %v970
  %v972 = vrot.slane %v480, %v971
  %974 = vmatprep.subr.mxu0 0.0
  %975 = vmatpush1.msra.mxu0 %v431
  %976 = vmatprep.subr.mxu0 0.0
  %977 = vmatpush1.msra.mxu0 %v430
  %978 = vmatprep.subr.mxu0 0.0
  %979 = vmatpush1.msra.mxu0 %v429
  %980 = vmatprep.subr.mxu0 0.0
  %981 = vmatpush1.msra.mxu0 %v428
  %982 = vmatprep.subr.mxu0 0.0
  %983 = vmatpush1.msra.mxu0 %v427
  %984 = vmatprep.subr.mxu0 0.0
  %985 = vmatpush1.msra.mxu0 %v426
  %986 = vmatprep.subr.mxu0 0.0
  %987 = vmatpush1.msra.mxu0 %v425
  %988 = vmatprep.subr.mxu0 0.0
  %989 = vmatpush1.msra.mxu0 %v424
  %990 = vmatprep.subr.mxu0 0.0
  %991 = vmatpush1.msra.mxu0 %v423
  %992 = vmatprep.subr.mxu0 0.0
  %993 = vmatpush1.msra.mxu0 %v422
  %994 = vmatprep.subr.mxu0 0.0
  %995 = vmatpush1.msra.mxu0 %v421
  %996 = vmatprep.subr.mxu0 0.0
  %997 = vmatpush1.msra.mxu0 %v420
  %998 = vmatprep.subr.mxu0 0.0
  %999 = vmatpush1.msra.mxu0 %v419
  %1000 = vmatprep.subr.mxu0 0.0
  %1001 = vmatpush1.msra.mxu0 %v418
  %1002 = vmatprep.subr.mxu0 0.0
  %1003 = vmatpush1.msra.mxu0 %v417
  %1004 = vmatprep.subr.mxu0 0.0
  %1005 = vmatpush1.msra.mxu0 %v416
  %1006 = vmatprep.subr.mxu0 0.0
  %1007 = vmatpush2.msra.mxu0 %v447
  %1008 = vmatprep.subr.mxu0 0.0
  %1009 = vmatpush2.msra.mxu0 %v446
  %1010 = vmatprep.subr.mxu0 0.0
  %1011 = vmatpush2.msra.mxu0 %v445
  %1012 = vmatprep.subr.mxu0 0.0
  %1013 = vmatpush2.msra.mxu0 %v444
  %1014 = vmatprep.subr.mxu0 0.0
  %1015 = vmatpush2.msra.mxu0 %v443
  %1016 = vmatprep.subr.mxu0 0.0
  %1017 = vmatpush2.msra.mxu0 %v442
  %1018 = vmatprep.subr.mxu0 0.0
  %1019 = vmatpush2.msra.mxu0 %v441
  %1020 = vmatprep.subr.mxu0 0.0
  %1021 = vmatpush2.msra.mxu0 %v440
  %1022 = vmatprep.subr.mxu0 0.0
  %1023 = vmatpush2.msra.mxu0 %v439
  %1024 = vmatprep.subr.mxu0 0.0
  %1025 = vmatpush2.msra.mxu0 %v438
  %1026 = vmatprep.subr.mxu0 0.0
  %1027 = vmatpush2.msra.mxu0 %v437
  %1028 = vmatprep.subr.mxu0 0.0
  %1029 = vmatpush2.msra.mxu0 %v436
  %1030 = vmatprep.subr.mxu0 0.0
  %1031 = vmatpush2.msra.mxu0 %v435
  %1032 = vmatprep.subr.mxu0 0.0
  %1033 = vmatpush2.msra.mxu0 %v434
  %1034 = vmatprep.subr.mxu0 0.0
  %1035 = vmatpush2.msra.mxu0 %v433
  %1036 = vmatprep.subr.mxu0 0.0
  %1037 = vmatpush2.msra.mxu0 %v432
  %1038 = vmatprep.mubr.f32.mxu0 %v965
  %1039 = vmatmul.mubr.f32.gmra.mxu0 %v964
  %v1040 = vpop.f32.mrf.mxu0
  %v1041 = vadd.f32 %v972, %v1040
  %v1042 = vpop.f32.mrf.mxu0
  %1043 = vdwg.mxu0
  %1044 = vmatprep.subr.mxu0 0.0
  %1045 = vmatpush1.msra.mxu0 %v463
  %1046 = vmatprep.subr.mxu0 0.0
  %1047 = vmatpush1.msra.mxu0 %v462
  %1048 = vmatprep.subr.mxu0 0.0
  %1049 = vmatpush1.msra.mxu0 %v461
  %1050 = vmatprep.subr.mxu0 0.0
  %1051 = vmatpush1.msra.mxu0 %v460
  %1052 = vmatprep.subr.mxu0 0.0
  %1053 = vmatpush1.msra.mxu0 %v459
  %1054 = vmatprep.subr.mxu0 0.0
  %1055 = vmatpush1.msra.mxu0 %v458
  %1056 = vmatprep.subr.mxu0 0.0
  %1057 = vmatpush1.msra.mxu0 %v457
  %1058 = vmatprep.subr.mxu0 0.0
  %1059 = vmatpush1.msra.mxu0 %v456
  %1060 = vmatprep.subr.mxu0 0.0
  %1061 = vmatpush1.msra.mxu0 %v455
  %1062 = vmatprep.subr.mxu0 0.0
  %1063 = vmatpush1.msra.mxu0 %v454
  %1064 = vmatprep.subr.mxu0 0.0
  %1065 = vmatpush1.msra.mxu0 %v453
  %1066 = vmatprep.subr.mxu0 0.0
  %1067 = vmatpush1.msra.mxu0 %v452
  %1068 = vmatprep.subr.mxu0 0.0
  %1069 = vmatpush1.msra.mxu0 %v451
  %1070 = vmatprep.subr.mxu0 0.0
  %1071 = vmatpush1.msra.mxu0 %v450
  %1072 = vmatprep.subr.mxu0 0.0
  %1073 = vmatpush1.msra.mxu0 %v449
  %1074 = vmatprep.subr.mxu0 0.0
  %1075 = vmatpush1.msra.mxu0 %v448
  %1076 = vmatprep.subr.mxu0 0.0
  %1077 = vmatpush2.msra.mxu0 %v479
  %1078 = vmatprep.subr.mxu0 0.0
  %1079 = vmatpush2.msra.mxu0 %v478
  %1080 = vmatprep.subr.mxu0 0.0
  %1081 = vmatpush2.msra.mxu0 %v477
  %1082 = vmatprep.subr.mxu0 0.0
  %1083 = vmatpush2.msra.mxu0 %v476
  %1084 = vmatprep.subr.mxu0 0.0
  %1085 = vmatpush2.msra.mxu0 %v475
  %1086 = vmatprep.subr.mxu0 0.0
  %1087 = vmatpush2.msra.mxu0 %v474
  %1088 = vmatprep.subr.mxu0 0.0
  %1089 = vmatpush2.msra.mxu0 %v473
  %1090 = vmatprep.subr.mxu0 0.0
  %1091 = vmatpush2.msra.mxu0 %v472
  %1092 = vmatprep.subr.mxu0 0.0
  %1093 = vmatpush2.msra.mxu0 %v471
  %1094 = vmatprep.subr.mxu0 0.0
  %1095 = vmatpush2.msra.mxu0 %v470
  %1096 = vmatprep.subr.mxu0 0.0
  %1097 = vmatpush2.msra.mxu0 %v469
  %1098 = vmatprep.subr.mxu0 0.0
  %1099 = vmatpush2.msra.mxu0 %v468
  %1100 = vmatprep.subr.mxu0 0.0
  %1101 = vmatpush2.msra.mxu0 %v467
  %1102 = vmatprep.subr.mxu0 0.0
  %1103 = vmatpush2.msra.mxu0 %v466
  %1104 = vmatprep.subr.mxu0 0.0
  %1105 = vmatpush2.msra.mxu0 %v465
  %1106 = vmatprep.subr.mxu0 0.0
  %1107 = vmatpush2.msra.mxu0 %v464
  %1108 = vmatprep.mubr.f32.mxu0 %v967
  %1109 = vmatmul.mubr.f32.gmra.mxu0 %v966
  %v1110 = vpop.f32.mrf.mxu0
  %v1111 = vadd.f32 %v1041, %v1110
  %v1112 = vpop.f32.mrf.mxu0
  %1113 = vdwg.mxu0
  %v1114 = vld [vmem:[%s7] sm:$0x3]
  %v1115 = vmul.f32 %v1111, %v1114
  %1116 = vst [vmem:[%s8] sm:$0x3] %v1115
  // Predicated region
  $region34: #{mlp_forward.1} parent=0 // pred_check
    _
  $region35: #{mlp_forward.1} parent=0 // pred_check_branch
    %1118 = sbr.rel (0) target = $region37
  $region36: #{mlp_forward.1} parent=0 // pred_region
    _
  $region37: #{mlp_forward.1} parent=0 // pred_fallthru
    _
  // Predicated region
  $region38: #{mlp_forward.1} parent=0 // pred_check
    _
  $region39: #{mlp_forward.1} parent=0 // pred_check_branch
    %1120 = sbr.rel (0) target = $region41
  $region40: #{mlp_forward.1} parent=0 // pred_region
    _
  $region41: #{mlp_forward.1} parent=0 // pred_fallthru
    _

</llo_original>
